<compile_context>
chip_gen: v6e
topology: v6e:2x2x1
jax: 0.10.0
libtpu: 0.0.40
codegen_flags: <defaults>
</compile_context>

<pallas_src>
import jax
import jax.numpy as jnp
from jax import lax
from jax.experimental import pallas as pl
from jax.experimental.pallas import tpu as pltpu


def qhead_kernel(q_ref, a_ref,
                 w0s_ref, w0a_ref, b0_ref,
                 w1_ref, b1_ref,
                 w2_ref, b2_ref,
                 wo_ref, bo_ref,
                 o_ref):
    # First layer: concat([q, a]) @ w0  ==  q @ w0[:S] + a @ w0[S:]  (no concat).
    h = (jnp.dot(q_ref[...], w0s_ref[...], preferred_element_type=jnp.float32)
         + jnp.dot(a_ref[...], w0a_ref[...], preferred_element_type=jnp.float32)
         + b0_ref[...])
    h = jnp.maximum(h, 0.0)

    h = jnp.dot(h.astype(w1_ref.dtype), w1_ref[...],
                preferred_element_type=jnp.float32) + b1_ref[...]
    h = jnp.maximum(h, 0.0)

    h = jnp.dot(h.astype(w2_ref.dtype), w2_ref[...],
                preferred_element_type=jnp.float32) + b2_ref[...]
    h = jnp.maximum(h, 0.0)

    # Output layer (H -> 1), lane-dense: (1, H) x (TM, H)^T -> (1, TM).
    out = lax.dot_general(
        wo_ref[...], h.astype(wo_ref.dtype),
        dimension_numbers=(((1,), (1,)), ((), ())),
        preferred_element_type=jnp.float32)
    o_ref[...] = (out + bo_ref[...]).astype(o_ref.dtype)


def _round_up(x, m):
    return (x + m - 1) // m * m


def vpt_critic_target_forward(q_h, action, params, *, tm=512,
                              compute_dtype=jnp.bfloat16):
    """q_h: (B, T, S), action: (B, T, A) -> Qpred: (B, T) float32."""
    B, T, S = q_h.shape
    A = action.shape[-1]
    M = B * T

    (w0, b0), (w1, b1), (w2, b2), (wo, bo) = params
    H = w0.shape[1]

    # Row-tile size: a multiple of 128 when tiling; one full block for tiny M.
    if M <= tm:
        tm_eff = _round_up(M, 8)
    else:
        tm_eff = _round_up(tm, 128)
    grid = pl.cdiv(M, tm_eff)
    m_pad = grid * tm_eff

    # Stream inputs in compute_dtype (bf16 halves HBM bytes on the x stream).
    q2 = q_h.reshape(M, S).astype(compute_dtype)
    a2 = action.reshape(M, A).astype(compute_dtype)
    if m_pad != M:
        q2 = jnp.pad(q2, ((0, m_pad - M), (0, 0)))
        a2 = jnp.pad(a2, ((0, m_pad - M), (0, 0)))

    # Split the first-layer weight so the (M, S+A) concat never hits HBM.
    w0s = w0[:S].astype(compute_dtype)
    w0a = w0[S:].astype(compute_dtype)
    w1c = w1.astype(compute_dtype)
    w2c = w2.astype(compute_dtype)
    wo_t = wo.reshape(1, H).astype(compute_dtype)   # (H, 1) -> (1, H)

    # Weights/biases: constant index map -> fetched once, VMEM-resident.
    resident = lambda shp: pl.BlockSpec(shp, lambda i: (0,) * len(shp))

    itemsize = jnp.dtype(compute_dtype).itemsize
    flops = 2 * m_pad * (S * H + A * H + 2 * H * H + H)
    bytes_accessed = (m_pad * (S + A) * itemsize                       # x stream
                      + (S * H + A * H + 2 * H * H + H) * itemsize     # weights
                      + (3 * H + 1) * 4                                # biases
                      + m_pad * 4)                                     # output
    cost = pl.CostEstimate(flops=int(flops), transcendentals=0,
                           bytes_accessed=int(bytes_accessed))

    out = pl.pallas_call(
        qhead_kernel,
        out_shape=jax.ShapeDtypeStruct((1, m_pad), jnp.float32),
        grid_spec=pltpu.PrefetchScalarGridSpec(
            num_scalar_prefetch=0,
            grid=(grid,),
            in_specs=[
                pl.BlockSpec((tm_eff, S), lambda i: (i, 0)),   # q rows (streamed)
                pl.BlockSpec((tm_eff, A), lambda i: (i, 0)),   # action rows
                resident((S, H)), resident((A, H)), resident((1, H)),
                resident((H, H)), resident((1, H)),
                resident((H, H)), resident((1, H)),
                resident((1, H)), resident((1, 1)),
            ],
            out_specs=pl.BlockSpec((1, tm_eff), lambda i: (0, i)),
        ),
        compiler_params=pltpu.CompilerParams(
            dimension_semantics=("parallel",)),
        cost_estimate=cost,
    )(q2, a2, w0s, w0a, b0, w1c, b1, w2c, b2, wo_t, bo)

    # (1, M_pad) lane-dense slab -> (M,) -> (B, T); matches PyTorch .squeeze(2).
    return out.reshape(m_pad)[:M].reshape(B, T)


def init_qhead_params(key, state_size, action_size, hidden_size,
                      num_hidden_layers, output_size):
    """Deterministic synthetic parameters (PyTorch-Linear-like init)."""
    assert num_hidden_layers == 2, "kernel is specialized for 2 hidden layers"
    dims = [state_size + action_size] + [hidden_size] * (num_hidden_layers + 1) \
           + [output_size]
    params = []
    for d_in, d_out in zip(dims[:-1], dims[1:]):
        key, kw, kb = jax.random.split(key, 3)
        bound = 1.0 / jnp.sqrt(d_in)
        w = jax.random.uniform(kw, (d_in, d_out), jnp.float32, -bound, bound)
        b = jax.random.uniform(kb, (1, d_out), jnp.float32, -bound, bound)
        params.append((w, b))
    return params


def reference_forward(q_h, action, params):
    x = jnp.concatenate([q_h, action], axis=-1)
    (w0, b0), (w1, b1), (w2, b2), (wo, bo) = params
    h = jnp.maximum(x @ w0 + b0, 0.0)
    h = jnp.maximum(h @ w1 + b1, 0.0)
    h = jnp.maximum(h @ w2 + b2, 0.0)
    out = h @ wo + bo                      # (B, T, 1)
    return out[:, :, 0]                    # squeeze(2)


if __name__ == "__main__":
    # Small shapes consistent with the module: q_h is a VPT observation
    # embedding sequence, action is an action vector per step.
    B, T = 2, 8
    state_size, action_size = 32, 8
    hidden_size, num_hidden_layers, output_size = 32, 2, 1

    key = jax.random.PRNGKey(0)
    key, kq, ka, kp = jax.random.split(key, 4)
    q_h = jax.random.normal(kq, (B, T, state_size), jnp.float32)
    action = jax.random.normal(ka, (B, T, action_size), jnp.float32)
    params = init_qhead_params(kp, state_size, action_size, hidden_size,
                               num_hidden_layers, output_size)

    ref = reference_forward(q_h, action, params)

    # f32 path: bit-tight check of the fused kernel structure.
    q_f32 = jax.block_until_ready(
        vpt_critic_target_forward(q_h, action, params,
                                  compute_dtype=jnp.float32))
    assert q_f32.shape == (B, T)
    assert jnp.allclose(q_f32, ref, atol=1e-4, rtol=1e-4)

    # Default bf16-streaming path (f32 accumulation): looser tolerance.
    q_bf16 = jax.block_until_ready(
        vpt_critic_target_forward(q_h, action, params))
    assert q_bf16.shape == (B, T)
    assert jnp.allclose(q_bf16, ref, atol=5e-2, rtol=5e-2)

    print("KERNEL_OK")
</pallas_src>

<mosaic_0001>
module attributes {stable_mosaic.version = 11 : i64} {
  func.func @qhead_kernel(%arg0: i32, %arg1: memref<16x32xf32, #tpu.memory_space<vmem>>, %arg2: memref<16x8xf32, #tpu.memory_space<vmem>>, %arg3: memref<32x32xf32, #tpu.memory_space<vmem>>, %arg4: memref<8x32xf32, #tpu.memory_space<vmem>>, %arg5: memref<1x32xf32, #tpu.memory_space<vmem>>, %arg6: memref<32x32xf32, #tpu.memory_space<vmem>>, %arg7: memref<1x32xf32, #tpu.memory_space<vmem>>, %arg8: memref<32x32xf32, #tpu.memory_space<vmem>>, %arg9: memref<1x32xf32, #tpu.memory_space<vmem>>, %arg10: memref<1x32xf32, #tpu.memory_space<vmem>>, %arg11: memref<1x1xf32, #tpu.memory_space<vmem>>, %arg12: memref<1x16xf32, #tpu.memory_space<vmem>>) attributes {dimension_semantics = [#tpu.dimension_semantics<parallel>], iteration_bounds = array<i64: 1>, scalar_prefetch = 0 : i64, scratch_operands = 0 : i64, tpu.core_type = #tpu.core_type<tc>, window_params = [{transform_indices = @transform_0, window_bounds = array<i64: 16, 32>}, {transform_indices = @transform_1, window_bounds = array<i64: 16, 8>}, {pipeline_mode = #tpu.pipeline_mode<synchronous>, transform_indices = @transform_2, window_bounds = array<i64: 32, 32>}, {pipeline_mode = #tpu.pipeline_mode<synchronous>, transform_indices = @transform_3, window_bounds = array<i64: 8, 32>}, {pipeline_mode = #tpu.pipeline_mode<synchronous>, transform_indices = @transform_4, window_bounds = array<i64: 1, 32>}, {pipeline_mode = #tpu.pipeline_mode<synchronous>, transform_indices = @transform_5, window_bounds = array<i64: 32, 32>}, {pipeline_mode = #tpu.pipeline_mode<synchronous>, transform_indices = @transform_6, window_bounds = array<i64: 1, 32>}, {pipeline_mode = #tpu.pipeline_mode<synchronous>, transform_indices = @transform_7, window_bounds = array<i64: 32, 32>}, {pipeline_mode = #tpu.pipeline_mode<synchronous>, transform_indices = @transform_8, window_bounds = array<i64: 1, 32>}, {pipeline_mode = #tpu.pipeline_mode<synchronous>, transform_indices = @transform_9, window_bounds = array<i64: 1, 32>}, {pipeline_mode = #tpu.pipeline_mode<synchronous>, transform_indices = @transform_10, window_bounds = array<i64: 1, 1>}, {transform_indices = @transform_11, window_bounds = array<i64: 1, 16>}]} {
    %c0 = arith.constant 0 : index
    %c0_0 = arith.constant 0 : index
    %0 = vector.load %arg1[%c0, %c0_0] : memref<16x32xf32, #tpu.memory_space<vmem>>, vector<16x32xf32>
    %c0_1 = arith.constant 0 : index
    %c0_2 = arith.constant 0 : index
    %1 = vector.load %arg3[%c0_1, %c0_2] : memref<32x32xf32, #tpu.memory_space<vmem>>, vector<32x32xf32>
    %cst = arith.constant dense<0.000000e+00> : vector<16x32xf32>
    %2 = tpu.matmul %0, %1, %cst {dimension_numbers = #tpu.dot_dimension_numbers<[1], [0], [0], [1], [0, 0, 1, 1], [], []>} : vector<16x32xf32>, vector<32x32xf32>, vector<16x32xf32> -> vector<16x32xf32>
    %c0_3 = arith.constant 0 : index
    %c0_4 = arith.constant 0 : index
    %3 = vector.load %arg2[%c0_3, %c0_4] : memref<16x8xf32, #tpu.memory_space<vmem>>, vector<16x8xf32>
    %c0_5 = arith.constant 0 : index
    %c0_6 = arith.constant 0 : index
    %4 = vector.load %arg4[%c0_5, %c0_6] : memref<8x32xf32, #tpu.memory_space<vmem>>, vector<8x32xf32>
    %cst_7 = arith.constant dense<0.000000e+00> : vector<16x32xf32>
    %5 = tpu.matmul %3, %4, %cst_7 {dimension_numbers = #tpu.dot_dimension_numbers<[1], [0], [0], [1], [0, 0, 1, 1], [], []>} : vector<16x8xf32>, vector<8x32xf32>, vector<16x32xf32> -> vector<16x32xf32>
    %6 = arith.addf %2, %5 : vector<16x32xf32>
    %c0_8 = arith.constant 0 : index
    %c0_9 = arith.constant 0 : index
    %7 = vector.load %arg5[%c0_8, %c0_9] : memref<1x32xf32, #tpu.memory_space<vmem>>, vector<1x32xf32>
    %8 = vector.broadcast %7 : vector<1x32xf32> to vector<16x32xf32>
    %9 = arith.addf %6, %8 : vector<16x32xf32>
    %cst_10 = arith.constant 0.000000e+00 : f32
    %10 = vector.broadcast %cst_10 : f32 to vector<16x32xf32>
    %11 = arith.maximumf %9, %10 : vector<16x32xf32>
    %c0_11 = arith.constant 0 : index
    %c0_12 = arith.constant 0 : index
    %12 = vector.load %arg6[%c0_11, %c0_12] : memref<32x32xf32, #tpu.memory_space<vmem>>, vector<32x32xf32>
    %cst_13 = arith.constant dense<0.000000e+00> : vector<16x32xf32>
    %13 = tpu.matmul %11, %12, %cst_13 {dimension_numbers = #tpu.dot_dimension_numbers<[1], [0], [0], [1], [0, 0, 1, 1], [], []>} : vector<16x32xf32>, vector<32x32xf32>, vector<16x32xf32> -> vector<16x32xf32>
    %c0_14 = arith.constant 0 : index
    %c0_15 = arith.constant 0 : index
    %14 = vector.load %arg7[%c0_14, %c0_15] : memref<1x32xf32, #tpu.memory_space<vmem>>, vector<1x32xf32>
    %15 = vector.broadcast %14 : vector<1x32xf32> to vector<16x32xf32>
    %16 = arith.addf %13, %15 : vector<16x32xf32>
    %cst_16 = arith.constant 0.000000e+00 : f32
    %17 = vector.broadcast %cst_16 : f32 to vector<16x32xf32>
    %18 = arith.maximumf %16, %17 : vector<16x32xf32>
    %c0_17 = arith.constant 0 : index
    %c0_18 = arith.constant 0 : index
    %19 = vector.load %arg8[%c0_17, %c0_18] : memref<32x32xf32, #tpu.memory_space<vmem>>, vector<32x32xf32>
    %cst_19 = arith.constant dense<0.000000e+00> : vector<16x32xf32>
    %20 = tpu.matmul %18, %19, %cst_19 {dimension_numbers = #tpu.dot_dimension_numbers<[1], [0], [0], [1], [0, 0, 1, 1], [], []>} : vector<16x32xf32>, vector<32x32xf32>, vector<16x32xf32> -> vector<16x32xf32>
    %c0_20 = arith.constant 0 : index
    %c0_21 = arith.constant 0 : index
    %21 = vector.load %arg9[%c0_20, %c0_21] : memref<1x32xf32, #tpu.memory_space<vmem>>, vector<1x32xf32>
    %22 = vector.broadcast %21 : vector<1x32xf32> to vector<16x32xf32>
    %23 = arith.addf %20, %22 : vector<16x32xf32>
    %cst_22 = arith.constant 0.000000e+00 : f32
    %24 = vector.broadcast %cst_22 : f32 to vector<16x32xf32>
    %25 = arith.maximumf %23, %24 : vector<16x32xf32>
    %c0_23 = arith.constant 0 : index
    %c0_24 = arith.constant 0 : index
    %26 = vector.load %arg10[%c0_23, %c0_24] : memref<1x32xf32, #tpu.memory_space<vmem>>, vector<1x32xf32>
    %cst_25 = arith.constant dense<0.000000e+00> : vector<1x16xf32>
    %27 = tpu.matmul %26, %25, %cst_25 {dimension_numbers = #tpu.dot_dimension_numbers<[1], [1], [0], [0], [0, 0, 1, 0], [], []>} : vector<1x32xf32>, vector<16x32xf32>, vector<1x16xf32> -> vector<1x16xf32>
    %c0_26 = arith.constant 0 : index
    %c0_27 = arith.constant 0 : index
    %28 = vector.load %arg11[%c0_26, %c0_27] : memref<1x1xf32, #tpu.memory_space<vmem>>, vector<1x1xf32>
    %29 = vector.broadcast %28 : vector<1x1xf32> to vector<1x16xf32>
    %30 = arith.addf %27, %29 : vector<1x16xf32>
    %c0_28 = arith.constant 0 : index
    %c0_29 = arith.constant 0 : index
    %31 = vector.load %arg12[%c0_28, %c0_29] : memref<1x16xf32, #tpu.memory_space<vmem>>, vector<1x16xf32>
    tpu.vector_store %arg12[%c0_28, %c0_29], %30 {strides = array<i32>} : memref<1x16xf32, #tpu.memory_space<vmem>>, vector<1x16xf32>,
    return
  }
  func.func @transform_0(%arg0: i32) -> (i32, i32) {
    %c0_i32 = arith.constant 0 : i32
    %c0_i32_0 = arith.constant 0 : i32
    return %arg0, %c0_i32 : i32, i32
  }
  func.func @transform_1(%arg0: i32) -> (i32, i32) {
    %c0_i32 = arith.constant 0 : i32
    %c0_i32_0 = arith.constant 0 : i32
    return %arg0, %c0_i32 : i32, i32
  }
  func.func @transform_2(%arg0: i32) -> (i32, i32) {
    %c0_i32 = arith.constant 0 : i32
    %c0_i32_0 = arith.constant 0 : i32
    %c0_i32_1 = arith.constant 0 : i32
    return %c0_i32, %c0_i32_0 : i32, i32
  }
  func.func @transform_3(%arg0: i32) -> (i32, i32) {
    %c0_i32 = arith.constant 0 : i32
    %c0_i32_0 = arith.constant 0 : i32
    %c0_i32_1 = arith.constant 0 : i32
    return %c0_i32, %c0_i32_0 : i32, i32
  }
  func.func @transform_4(%arg0: i32) -> (i32, i32) {
    %c0_i32 = arith.constant 0 : i32
    %c0_i32_0 = arith.constant 0 : i32
    %c0_i32_1 = arith.constant 0 : i32
    return %c0_i32, %c0_i32_0 : i32, i32
  }
  func.func @transform_5(%arg0: i32) -> (i32, i32) {
    %c0_i32 = arith.constant 0 : i32
    %c0_i32_0 = arith.constant 0 : i32
    %c0_i32_1 = arith.constant 0 : i32
    return %c0_i32, %c0_i32_0 : i32, i32
  }
  func.func @transform_6(%arg0: i32) -> (i32, i32) {
    %c0_i32 = arith.constant 0 : i32
    %c0_i32_0 = arith.constant 0 : i32
    %c0_i32_1 = arith.constant 0 : i32
    return %c0_i32, %c0_i32_0 : i32, i32
  }
  func.func @transform_7(%arg0: i32) -> (i32, i32) {
    %c0_i32 = arith.constant 0 : i32
    %c0_i32_0 = arith.constant 0 : i32
    %c0_i32_1 = arith.constant 0 : i32
    return %c0_i32, %c0_i32_0 : i32, i32
  }
  func.func @transform_8(%arg0: i32) -> (i32, i32) {
    %c0_i32 = arith.constant 0 : i32
    %c0_i32_0 = arith.constant 0 : i32
    %c0_i32_1 = arith.constant 0 : i32
    return %c0_i32, %c0_i32_0 : i32, i32
  }
  func.func @transform_9(%arg0: i32) -> (i32, i32) {
    %c0_i32 = arith.constant 0 : i32
    %c0_i32_0 = arith.constant 0 : i32
    %c0_i32_1 = arith.constant 0 : i32
    return %c0_i32, %c0_i32_0 : i32, i32
  }
  func.func @transform_10(%arg0: i32) -> (i32, i32) {
    %c0_i32 = arith.constant 0 : i32
    %c0_i32_0 = arith.constant 0 : i32
    %c0_i32_1 = arith.constant 0 : i32
    return %c0_i32, %c0_i32_0 : i32, i32
  }
  func.func @transform_11(%arg0: i32) -> (i32, i32) {
    %c0_i32 = arith.constant 0 : i32
    %c0_i32_0 = arith.constant 0 : i32
    return %c0_i32, %arg0 : i32, i32
  }
}

</mosaic_0001>

<llo_original>
// kernel: tpu_custom_call.1
$region0: #{tpu_custom_call.1}
  #allocation0 [shape = 'u32[]', space=smem, size = 0x4, offset = 0x4, fixed_abs, tag = 'smem constant byte address 0x4 - core index']
  #allocation1 [shape = 'u32[144,128]{1,0:T(1,128)}', space=vmem, size = 0x12000, scoped, tag = 'internal scratch']
  #allocation2 [shape = 'f32[1,1]{1,0:T(1,128)S(1)}', space=vmem, size = 0x200, scoped, tag = 'scoped memory for tpu_custom_call.1']
  %s0 = inlined_call_operand.hbm [shape: f32[16,32], index: 0, kind: input, shape index: {}]
  %s1 = inlined_call_operand.vmem [shape: f32[16,8], index: 1, kind: input, shape index: {}]
  %s2 = inlined_call_operand.hbm [shape: f32[32,32], index: 2, kind: input, shape index: {}]
  %s3 = inlined_call_operand.hbm [shape: f32[8,32], index: 3, kind: input, shape index: {}]
  %s4 = inlined_call_operand.vmem [shape: f32[1,32], index: 4, kind: input, shape index: {}]
  %s5 = inlined_call_operand.vmem [shape: f32[32,32], index: 5, kind: input, shape index: {}]
  %s6 = inlined_call_operand.vmem [shape: f32[1,32], index: 6, kind: input, shape index: {}]
  %s7 = inlined_call_operand.hbm [shape: f32[32,32], index: 7, kind: input, shape index: {}]
  %s8 = inlined_call_operand.vmem [shape: f32[1,32], index: 8, kind: input, shape index: {}]
  %s9 = inlined_call_operand.vmem [shape: f32[1,32], index: 9, kind: input, shape index: {}]
  %s10 = inlined_call_operand.<no memory space> [shape: f32[1,1], index: 10, kind: input, shape index: {}]
  %s11 = inlined_call_operand.hbm [shape: f32[1,16], index: 11, kind: output, shape index: {}]
  %s12 = sld [smem:[#allocation0]]
  $region70: #{tpu_custom_call.1} parent=0
    _
  %s14 = ssub.s32 1, %s12
  %s15 = scalar_select 0, %s14, %s12
  %v16 = vstv %s10
  %17 = vst [vmem:[#allocation2] sm:$0x1] %v16
  $region1: #{tpu_custom_call.1} parent=0
    #allocation3 [shape = 'u8[8192]{0}', space=vmem, size = 0x2000, scoped, tag = 'input window, operand 0, single buffered']
    #allocation4 [shape = 's32[1]{0}', space=sflag, size = 0x4, scoped, tag = 'scoped memory for tpu_custom_call.1']
    #allocation5 [shape = 's32[1]{0}', space=sflag, size = 0x4, scoped, tag = 'scoped memory for tpu_custom_call.1']
    #allocation6 [shape = 'u8[16384]{0}', space=vmem, size = 0x4000, scoped, tag = 'input window, operand 2, single buffered']
    #allocation7 [shape = 's32[1]{0}', space=sflag, size = 0x4, scoped, tag = 'scoped memory for tpu_custom_call.1']
    #allocation8 [shape = 'u8[4096]{0}', space=vmem, size = 0x1000, scoped, tag = 'input window, operand 3, single buffered']
    #allocation9 [shape = 'u8[16384]{0}', space=vmem, size = 0x4000, scoped, tag = 'input window, operand 7, single buffered']
    #allocation10 [shape = 's32[1]{0}', space=sflag, size = 0x4, scoped, tag = 'scoped memory for tpu_custom_call.1']
    #allocation11 [shape = 'u8[512]{0}', space=vmem, size = 0x400, scoped, tag = 'output window, operand 0, single buffered']
    %18 = vsyncpa [#allocation4], 0
    %19 = vsyncpa [#allocation7], 0
    %20 = vsyncpa [#allocation10], 0
    %21 = vsyncpa [#allocation5], 0
    // Predicated region
    $region2: #{tpu_custom_call.1} parent=1 // pred_check
      _
    $region3: #{tpu_custom_call.1} parent=1 // pred_check_branch
      %23 = sbr.rel (0) target = $region5
    $region4: #{tpu_custom_call.1} parent=1 // pred_region
      %s25 = ssub.s32 256, 256
      %26 = vsyncadd [#allocation4], %s25
      %s27 = sshll.u32 [#allocation3], 4
      %s28 = int_to_ptr.vmem [resolvable:$true] %s27
      %33 = dma.hbm_to_vmem [thread:$0]  %s0, 256, %s28, [#allocation4], 128, 128, 8
    $region5: #{tpu_custom_call.1} parent=1 // pred_fallthru
      _
    // Predicated region
    $region6: #{tpu_custom_call.1} parent=1 // pred_check
      _
    $region7: #{tpu_custom_call.1} parent=1 // pred_check_branch
      %35 = sbr.rel (0) target = $region9
    $region8: #{tpu_custom_call.1} parent=1 // pred_region
      _
    $region9: #{tpu_custom_call.1} parent=1 // pred_fallthru
      _
    // Predicated region
    $region10: #{tpu_custom_call.1} parent=1 // pred_check
      _
    $region11: #{tpu_custom_call.1} parent=1 // pred_check_branch
      %37 = sbr.rel (0) target = $region13
    $region12: #{tpu_custom_call.1} parent=1 // pred_region
      %s39 = ssub.s32 512, 512
      %40 = vsyncadd [#allocation7], %s39
      %s41 = sshll.u32 [#allocation6], 4
      %s42 = int_to_ptr.vmem [resolvable:$true] %s41
      %47 = dma.hbm_to_vmem [thread:$0]  %s2, 512, %s42, [#allocation7], 128, 128, 8
    $region13: #{tpu_custom_call.1} parent=1 // pred_fallthru
      _
    // Predicated region
    $region14: #{tpu_custom_call.1} parent=1 // pred_check
      _
    $region15: #{tpu_custom_call.1} parent=1 // pred_check_branch
      %49 = sbr.rel (0) target = $region17
    $region16: #{tpu_custom_call.1} parent=1 // pred_region
      %s51 = ssub.s32 128, 128
      %52 = vsyncadd [#allocation7], %s51
      %s54 = sshll.u32 [#allocation8], 4
      %s55 = int_to_ptr.vmem [resolvable:$true] %s54
      %57 = dma.hbm_to_vmem [thread:$0]  %s3, 128, %s55, [#allocation7]
    $region17: #{tpu_custom_call.1} parent=1 // pred_fallthru
      _
    // Predicated region
    $region18: #{tpu_custom_call.1} parent=1 // pred_check
      _
    $region19: #{tpu_custom_call.1} parent=1 // pred_check_branch
      %59 = sbr.rel (0) target = $region21
    $region20: #{tpu_custom_call.1} parent=1 // pred_region
      _
    $region21: #{tpu_custom_call.1} parent=1 // pred_fallthru
      _
    // Predicated region
    $region22: #{tpu_custom_call.1} parent=1 // pred_check
      _
    $region23: #{tpu_custom_call.1} parent=1 // pred_check_branch
      %61 = sbr.rel (0) target = $region25
    $region24: #{tpu_custom_call.1} parent=1 // pred_region
      _
    $region25: #{tpu_custom_call.1} parent=1 // pred_fallthru
      _
    // Predicated region
    $region26: #{tpu_custom_call.1} parent=1 // pred_check
      _
    $region27: #{tpu_custom_call.1} parent=1 // pred_check_branch
      %63 = sbr.rel (0) target = $region29
    $region28: #{tpu_custom_call.1} parent=1 // pred_region
      _
    $region29: #{tpu_custom_call.1} parent=1 // pred_fallthru
      _
    // Predicated region
    $region30: #{tpu_custom_call.1} parent=1 // pred_check
      _
    $region31: #{tpu_custom_call.1} parent=1 // pred_check_branch
      %65 = sbr.rel (0) target = $region33
    $region32: #{tpu_custom_call.1} parent=1 // pred_region
      %s67 = ssub.s32 512, 512
      %68 = vsyncadd [#allocation10], %s67
      %s69 = sshll.u32 [#allocation9], 4
      %s70 = int_to_ptr.vmem [resolvable:$true] %s69
      %75 = dma.hbm_to_vmem [thread:$0]  %s7, 512, %s70, [#allocation10], 128, 128, 8
    $region33: #{tpu_custom_call.1} parent=1 // pred_fallthru
      _
    // Predicated region
    $region34: #{tpu_custom_call.1} parent=1 // pred_check
      _
    $region35: #{tpu_custom_call.1} parent=1 // pred_check_branch
      %77 = sbr.rel (0) target = $region37
    $region36: #{tpu_custom_call.1} parent=1 // pred_region
      _
    $region37: #{tpu_custom_call.1} parent=1 // pred_fallthru
      _
    // Predicated region
    $region38: #{tpu_custom_call.1} parent=1 // pred_check
      _
    $region39: #{tpu_custom_call.1} parent=1 // pred_check_branch
      %79 = sbr.rel (0) target = $region41
    $region40: #{tpu_custom_call.1} parent=1 // pred_region
      _
    $region41: #{tpu_custom_call.1} parent=1 // pred_fallthru
      _
    // Predicated region
    $region42: #{tpu_custom_call.1} parent=1 // pred_check
      _
    $region43: #{tpu_custom_call.1} parent=1 // pred_check_branch
      %81 = sbr.rel (0) target = $region45
    $region44: #{tpu_custom_call.1} parent=1 // pred_region
      _
    $region45: #{tpu_custom_call.1} parent=1 // pred_fallthru
      _
    // Predicated region
    $region46: #{tpu_custom_call.1} parent=1 // pred_check
      _
    $region47: #{tpu_custom_call.1} parent=1 // pred_check_branch
      %83 = sbr.rel (0) target = $region49
    $region48: #{tpu_custom_call.1} parent=1 // pred_region
      %84 = dma.done [#allocation4], 256
    $region49: #{tpu_custom_call.1} parent=1 // pred_fallthru
      _
    // Predicated region
    $region50: #{tpu_custom_call.1} parent=1 // pred_check
      _
    $region51: #{tpu_custom_call.1} parent=1 // pred_check_branch
      %86 = sbr.rel (0) target = $region53
    $region52: #{tpu_custom_call.1} parent=1 // pred_region
      %87 = dma.done [#allocation7], 512
    $region53: #{tpu_custom_call.1} parent=1 // pred_fallthru
      _
    // Predicated region
    $region54: #{tpu_custom_call.1} parent=1 // pred_check
      _
    $region55: #{tpu_custom_call.1} parent=1 // pred_check_branch
      %89 = sbr.rel (0) target = $region57
    $region56: #{tpu_custom_call.1} parent=1 // pred_region
      %90 = dma.done [#allocation7], 128
    $region57: #{tpu_custom_call.1} parent=1 // pred_fallthru
      _
    // Predicated region
    $region58: #{tpu_custom_call.1} parent=1 // pred_check
      _
    $region59: #{tpu_custom_call.1} parent=1 // pred_check_branch
      %92 = sbr.rel (0) target = $region61
    $region60: #{tpu_custom_call.1} parent=1 // pred_region
      %93 = dma.done [#allocation10], 512
    $region61: #{tpu_custom_call.1} parent=1 // pred_fallthru
      _
    %v94 = vld [vmem:[#allocation3] sm:$0xff]
    %v95 = vld [vmem:[#allocation3 + $0x8] sm:$0xff]
    %v96 = vld [vmem:[#allocation6] sm:$0xff]
    %v97 = vld [vmem:[#allocation6 + $0x8] sm:$0xff]
    %v98 = vld [vmem:[#allocation6 + $0x10] sm:$0xff]
    %v99 = vld [vmem:[#allocation6 + $0x18] sm:$0xff]
    %v100 = vld [vmem:[%s1] sm:$0xff]
    %v101 = vld [vmem:[%s1 + $0x8] sm:$0xff]
    %v102 = vld [vmem:[#allocation8] sm:$0xff]
    %vm103 = vcmask 64512
    %v105 = vsel %vm103, %v100, 0
    %v108 = vsel %vm103, %v101, 0
    %110 = vmatprep.subr.mxu0 0.0
    %111 = vmatpush1.msra.mxu0 0.0
    %112 = vmatprep.subr.mxu0 0.0
    %113 = vmatpush1.msra.mxu0 0.0
    %114 = vmatprep.subr.mxu0 0.0
    %115 = vmatpush1.msra.mxu0 0.0
    %116 = vmatprep.subr.mxu0 0.0
    %117 = vmatpush1.msra.mxu0 0.0
    %118 = vmatprep.subr.mxu0 0.0
    %119 = vmatpush1.msra.mxu0 0.0
    %120 = vmatprep.subr.mxu0 0.0
    %121 = vmatpush1.msra.mxu0 0.0
    %122 = vmatprep.subr.mxu0 0.0
    %123 = vmatpush1.msra.mxu0 0.0
    %124 = vmatprep.subr.mxu0 0.0
    %125 = vmatpush1.msra.mxu0 0.0
    %126 = vmatprep.subr.mxu0 0.0
    %127 = vmatpush1.msra.mxu0 0.0
    %128 = vmatprep.subr.mxu0 0.0
    %129 = vmatpush1.msra.mxu0 0.0
    %130 = vmatprep.subr.mxu0 0.0
    %131 = vmatpush1.msra.mxu0 0.0
    %132 = vmatprep.subr.mxu0 0.0
    %133 = vmatpush1.msra.mxu0 0.0
    %134 = vmatprep.subr.mxu0 0.0
    %135 = vmatpush1.msra.mxu0 0.0
    %136 = vmatprep.subr.mxu0 0.0
    %137 = vmatpush1.msra.mxu0 0.0
    %138 = vmatprep.subr.mxu0 0.0
    %139 = vmatpush1.msra.mxu0 0.0
    %140 = vmatprep.subr.mxu0 0.0
    %141 = vmatpush1.msra.mxu0 %v102
    %142 = vmatprep.subr.mxu0 0.0
    %143 = vmatpush2.msra.mxu0 0.0
    %144 = vmatprep.subr.mxu0 0.0
    %145 = vmatpush2.msra.mxu0 0.0
    %146 = vmatprep.subr.mxu0 0.0
    %147 = vmatpush2.msra.mxu0 0.0
    %148 = vmatprep.subr.mxu0 0.0
    %149 = vmatpush2.msra.mxu0 0.0
    %150 = vmatprep.subr.mxu0 0.0
    %151 = vmatpush2.msra.mxu0 0.0
    %152 = vmatprep.subr.mxu0 0.0
    %153 = vmatpush2.msra.mxu0 0.0
    %154 = vmatprep.subr.mxu0 0.0
    %155 = vmatpush2.msra.mxu0 0.0
    %156 = vmatprep.subr.mxu0 0.0
    %157 = vmatpush2.msra.mxu0 0.0
    %158 = vmatprep.subr.mxu0 0.0
    %159 = vmatpush2.msra.mxu0 0.0
    %160 = vmatprep.subr.mxu0 0.0
    %161 = vmatpush2.msra.mxu0 0.0
    %162 = vmatprep.subr.mxu0 0.0
    %163 = vmatpush2.msra.mxu0 0.0
    %164 = vmatprep.subr.mxu0 0.0
    %165 = vmatpush2.msra.mxu0 0.0
    %166 = vmatprep.subr.mxu0 0.0
    %167 = vmatpush2.msra.mxu0 0.0
    %168 = vmatprep.subr.mxu0 0.0
    %169 = vmatpush2.msra.mxu0 0.0
    %170 = vmatprep.subr.mxu0 0.0
    %171 = vmatpush2.msra.mxu0 0.0
    %172 = vmatprep.subr.mxu0 0.0
    %173 = vmatpush2.msra.mxu0 0.0
    %174 = vmatprep.mubr.f32.mxu0 0.0
    %175 = vmatmul.mubr.f32.gmra.mxu0 %v105
    %v176 = vpop.f32.mrf.mxu0
    %v177 = vadd.f32 0.0, %v176
    %v178 = vpop.f32.mrf.mxu0
    %179 = vmatprep.mubr.f32.mxu0 0.0
    %180 = vmatmul.mubr.f32.gmra.mxu0 %v108
    %v181 = vpop.f32.mrf.mxu0
    %v182 = vadd.f32 0.0, %v181
    %v183 = vpop.f32.mrf.mxu0
    %184 = vdwg.mxu0
    %vm185 = vcmask 261120
    %v187 = vsel %vm185, %v94, 0
    %v190 = vsel %vm185, %v95, 0
    %192 = vmatprep.subr.mxu0 0.0
    %193 = vmatpush1.msra.mxu0 0.0
    %194 = vmatprep.subr.mxu0 0.0
    %195 = vmatpush1.msra.mxu0 0.0
    %196 = vmatprep.subr.mxu0 0.0
    %197 = vmatpush1.msra.mxu0 0.0
    %198 = vmatprep.subr.mxu0 0.0
    %199 = vmatpush1.msra.mxu0 0.0
    %200 = vmatprep.subr.mxu0 0.0
    %201 = vmatpush1.msra.mxu0 0.0
    %202 = vmatprep.subr.mxu0 0.0
    %203 = vmatpush1.msra.mxu0 0.0
    %204 = vmatprep.subr.mxu0 0.0
    %205 = vmatpush1.msra.mxu0 0.0
    %206 = vmatprep.subr.mxu0 0.0
    %207 = vmatpush1.msra.mxu0 0.0
    %208 = vmatprep.subr.mxu0 0.0
    %209 = vmatpush1.msra.mxu0 0.0
    %210 = vmatprep.subr.mxu0 0.0
    %211 = vmatpush1.msra.mxu0 0.0
    %212 = vmatprep.subr.mxu0 0.0
    %213 = vmatpush1.msra.mxu0 0.0
    %214 = vmatprep.subr.mxu0 0.0
    %215 = vmatpush1.msra.mxu0 0.0
    %216 = vmatprep.subr.mxu0 0.0
    %217 = vmatpush1.msra.mxu0 %v99
    %218 = vmatprep.subr.mxu0 0.0
    %219 = vmatpush1.msra.mxu0 %v98
    %220 = vmatprep.subr.mxu0 0.0
    %221 = vmatpush1.msra.mxu0 %v97
    %222 = vmatprep.subr.mxu0 0.0
    %223 = vmatpush1.msra.mxu0 %v96
    %224 = vmatprep.subr.mxu0 0.0
    %225 = vmatpush2.msra.mxu0 0.0
    %226 = vmatprep.subr.mxu0 0.0
    %227 = vmatpush2.msra.mxu0 0.0
    %228 = vmatprep.subr.mxu0 0.0
    %229 = vmatpush2.msra.mxu0 0.0
    %230 = vmatprep.subr.mxu0 0.0
    %231 = vmatpush2.msra.mxu0 0.0
    %232 = vmatprep.subr.mxu0 0.0
    %233 = vmatpush2.msra.mxu0 0.0
    %234 = vmatprep.subr.mxu0 0.0
    %235 = vmatpush2.msra.mxu0 0.0
    %236 = vmatprep.subr.mxu0 0.0
    %237 = vmatpush2.msra.mxu0 0.0
    %238 = vmatprep.subr.mxu0 0.0
    %239 = vmatpush2.msra.mxu0 0.0
    %240 = vmatprep.subr.mxu0 0.0
    %241 = vmatpush2.msra.mxu0 0.0
    %242 = vmatprep.subr.mxu0 0.0
    %243 = vmatpush2.msra.mxu0 0.0
    %244 = vmatprep.subr.mxu0 0.0
    %245 = vmatpush2.msra.mxu0 0.0
    %246 = vmatprep.subr.mxu0 0.0
    %247 = vmatpush2.msra.mxu0 0.0
    %248 = vmatprep.subr.mxu0 0.0
    %249 = vmatpush2.msra.mxu0 0.0
    %250 = vmatprep.subr.mxu0 0.0
    %251 = vmatpush2.msra.mxu0 0.0
    %252 = vmatprep.subr.mxu0 0.0
    %253 = vmatpush2.msra.mxu0 0.0
    %254 = vmatprep.subr.mxu0 0.0
    %255 = vmatpush2.msra.mxu0 0.0
    %256 = vmatprep.mubr.f32.mxu0 0.0
    %257 = vmatmul.mubr.f32.gmra.mxu0 %v187
    %v258 = vpop.f32.mrf.mxu0
    %v259 = vadd.f32 %v177, %v258
    %v260 = vpop.f32.mrf.mxu0
    %261 = vmatprep.mubr.f32.mxu0 0.0
    %262 = vmatmul.mubr.f32.gmra.mxu0 %v190
    %v263 = vpop.f32.mrf.mxu0
    %v264 = vadd.f32 %v182, %v263
    %v265 = vpop.f32.mrf.mxu0
    %266 = vdwg.mxu0
    %v267 = vld [vmem:[%s4] sm:$0x1]
    %v269 = vlaneseq
    %v270 = vshrl.u32 %v269, 7
    %v271 = vsub.s32 0, %v270
    %v272 = vrot.slane %v267, %v271
    %v274 = vadd.f32 %v259, %v272
    %v275 = vadd.f32 %v264, %v272
    %v276 = vmax.f32 %v274, 0.0
    %v277 = vmax.f32 %v275, 0.0
    %v278 = vld [vmem:[%s5] sm:$0xff]
    %v279 = vld [vmem:[%s5 + $0x8] sm:$0xff]
    %v280 = vld [vmem:[%s5 + $0x10] sm:$0xff]
    %v281 = vld [vmem:[%s5 + $0x18] sm:$0xff]
    %v282 = vld [vmem:[%s6] sm:$0x1]
    %v284 = vlaneseq
    %v285 = vshrl.u32 %v284, 7
    %v286 = vsub.s32 0, %v285
    %v287 = vrot.slane %v282, %v286
    %v290 = vsel %vm185, %v276, 0
    %v293 = vsel %vm185, %v277, 0
    %295 = vmatprep.subr.mxu0 0.0
    %296 = vmatpush1.msra.mxu0 0.0
    %297 = vmatprep.subr.mxu0 0.0
    %298 = vmatpush1.msra.mxu0 0.0
    %299 = vmatprep.subr.mxu0 0.0
    %300 = vmatpush1.msra.mxu0 0.0
    %301 = vmatprep.subr.mxu0 0.0
    %302 = vmatpush1.msra.mxu0 0.0
    %303 = vmatprep.subr.mxu0 0.0
    %304 = vmatpush1.msra.mxu0 0.0
    %305 = vmatprep.subr.mxu0 0.0
    %306 = vmatpush1.msra.mxu0 0.0
    %307 = vmatprep.subr.mxu0 0.0
    %308 = vmatpush1.msra.mxu0 0.0
    %309 = vmatprep.subr.mxu0 0.0
    %310 = vmatpush1.msra.mxu0 0.0
    %311 = vmatprep.subr.mxu0 0.0
    %312 = vmatpush1.msra.mxu0 0.0
    %313 = vmatprep.subr.mxu0 0.0
    %314 = vmatpush1.msra.mxu0 0.0
    %315 = vmatprep.subr.mxu0 0.0
    %316 = vmatpush1.msra.mxu0 0.0
    %317 = vmatprep.subr.mxu0 0.0
    %318 = vmatpush1.msra.mxu0 0.0
    %319 = vmatprep.subr.mxu0 0.0
    %320 = vmatpush1.msra.mxu0 %v281
    %321 = vmatprep.subr.mxu0 0.0
    %322 = vmatpush1.msra.mxu0 %v280
    %323 = vmatprep.subr.mxu0 0.0
    %324 = vmatpush1.msra.mxu0 %v279
    %325 = vmatprep.subr.mxu0 0.0
    %326 = vmatpush1.msra.mxu0 %v278
    %327 = vmatprep.subr.mxu0 0.0
    %328 = vmatpush2.msra.mxu0 0.0
    %329 = vmatprep.subr.mxu0 0.0
    %330 = vmatpush2.msra.mxu0 0.0
    %331 = vmatprep.subr.mxu0 0.0
    %332 = vmatpush2.msra.mxu0 0.0
    %333 = vmatprep.subr.mxu0 0.0
    %334 = vmatpush2.msra.mxu0 0.0
    %335 = vmatprep.subr.mxu0 0.0
    %336 = vmatpush2.msra.mxu0 0.0
    %337 = vmatprep.subr.mxu0 0.0
    %338 = vmatpush2.msra.mxu0 0.0
    %339 = vmatprep.subr.mxu0 0.0
    %340 = vmatpush2.msra.mxu0 0.0
    %341 = vmatprep.subr.mxu0 0.0
    %342 = vmatpush2.msra.mxu0 0.0
    %343 = vmatprep.subr.mxu0 0.0
    %344 = vmatpush2.msra.mxu0 0.0
    %345 = vmatprep.subr.mxu0 0.0
    %346 = vmatpush2.msra.mxu0 0.0
    %347 = vmatprep.subr.mxu0 0.0
    %348 = vmatpush2.msra.mxu0 0.0
    %349 = vmatprep.subr.mxu0 0.0
    %350 = vmatpush2.msra.mxu0 0.0
    %351 = vmatprep.subr.mxu0 0.0
    %352 = vmatpush2.msra.mxu0 0.0
    %353 = vmatprep.subr.mxu0 0.0
    %354 = vmatpush2.msra.mxu0 0.0
    %355 = vmatprep.subr.mxu0 0.0
    %356 = vmatpush2.msra.mxu0 0.0
    %357 = vmatprep.subr.mxu0 0.0
    %358 = vmatpush2.msra.mxu0 0.0
    %359 = vmatprep.mubr.f32.mxu0 0.0
    %360 = vmatmul.mubr.f32.gmra.mxu0 %v290
    %v361 = vpop.f32.mrf.mxu0
    %v362 = vadd.f32 %v287, %v361
    %v363 = vpop.f32.mrf.mxu0
    %364 = vmatprep.mubr.f32.mxu0 0.0
    %365 = vmatmul.mubr.f32.gmra.mxu0 %v293
    %v366 = vpop.f32.mrf.mxu0
    %v367 = vadd.f32 %v287, %v366
    %v368 = vpop.f32.mrf.mxu0
    %369 = vdwg.mxu0
    %v370 = vmax.f32 %v362, 0.0
    %v371 = vmax.f32 %v367, 0.0
    %v372 = vld [vmem:[#allocation9] sm:$0xff]
    %v373 = vld [vmem:[#allocation9 + $0x8] sm:$0xff]
    %v374 = vld [vmem:[#allocation9 + $0x10] sm:$0xff]
    %v375 = vld [vmem:[#allocation9 + $0x18] sm:$0xff]
    %v376 = vld [vmem:[%s8] sm:$0x1]
    %v378 = vlaneseq
    %v379 = vshrl.u32 %v378, 7
    %v380 = vsub.s32 0, %v379
    %v381 = vrot.slane %v376, %v380
    %v384 = vsel %vm185, %v370, 0
    %v387 = vsel %vm185, %v371, 0
    %389 = vmatprep.subr.mxu0 0.0
    %390 = vmatpush1.msra.mxu0 0.0
    %391 = vmatprep.subr.mxu0 0.0
    %392 = vmatpush1.msra.mxu0 0.0
    %393 = vmatprep.subr.mxu0 0.0
    %394 = vmatpush1.msra.mxu0 0.0
    %395 = vmatprep.subr.mxu0 0.0
    %396 = vmatpush1.msra.mxu0 0.0
    %397 = vmatprep.subr.mxu0 0.0
    %398 = vmatpush1.msra.mxu0 0.0
    %399 = vmatprep.subr.mxu0 0.0
    %400 = vmatpush1.msra.mxu0 0.0
    %401 = vmatprep.subr.mxu0 0.0
    %402 = vmatpush1.msra.mxu0 0.0
    %403 = vmatprep.subr.mxu0 0.0
    %404 = vmatpush1.msra.mxu0 0.0
    %405 = vmatprep.subr.mxu0 0.0
    %406 = vmatpush1.msra.mxu0 0.0
    %407 = vmatprep.subr.mxu0 0.0
    %408 = vmatpush1.msra.mxu0 0.0
    %409 = vmatprep.subr.mxu0 0.0
    %410 = vmatpush1.msra.mxu0 0.0
    %411 = vmatprep.subr.mxu0 0.0
    %412 = vmatpush1.msra.mxu0 0.0
    %413 = vmatprep.subr.mxu0 0.0
    %414 = vmatpush1.msra.mxu0 %v375
    %415 = vmatprep.subr.mxu0 0.0
    %416 = vmatpush1.msra.mxu0 %v374
    %417 = vmatprep.subr.mxu0 0.0
    %418 = vmatpush1.msra.mxu0 %v373
    %419 = vmatprep.subr.mxu0 0.0
    %420 = vmatpush1.msra.mxu0 %v372
    %421 = vmatprep.subr.mxu0 0.0
    %422 = vmatpush2.msra.mxu0 0.0
    %423 = vmatprep.subr.mxu0 0.0
    %424 = vmatpush2.msra.mxu0 0.0
    %425 = vmatprep.subr.mxu0 0.0
    %426 = vmatpush2.msra.mxu0 0.0
    %427 = vmatprep.subr.mxu0 0.0
    %428 = vmatpush2.msra.mxu0 0.0
    %429 = vmatprep.subr.mxu0 0.0
    %430 = vmatpush2.msra.mxu0 0.0
    %431 = vmatprep.subr.mxu0 0.0
    %432 = vmatpush2.msra.mxu0 0.0
    %433 = vmatprep.subr.mxu0 0.0
    %434 = vmatpush2.msra.mxu0 0.0
    %435 = vmatprep.subr.mxu0 0.0
    %436 = vmatpush2.msra.mxu0 0.0
    %437 = vmatprep.subr.mxu0 0.0
    %438 = vmatpush2.msra.mxu0 0.0
    %439 = vmatprep.subr.mxu0 0.0
    %440 = vmatpush2.msra.mxu0 0.0
    %441 = vmatprep.subr.mxu0 0.0
    %442 = vmatpush2.msra.mxu0 0.0
    %443 = vmatprep.subr.mxu0 0.0
    %444 = vmatpush2.msra.mxu0 0.0
    %445 = vmatprep.subr.mxu0 0.0
    %446 = vmatpush2.msra.mxu0 0.0
    %447 = vmatprep.subr.mxu0 0.0
    %448 = vmatpush2.msra.mxu0 0.0
    %449 = vmatprep.subr.mxu0 0.0
    %450 = vmatpush2.msra.mxu0 0.0
    %451 = vmatprep.subr.mxu0 0.0
    %452 = vmatpush2.msra.mxu0 0.0
    %453 = vmatprep.mubr.f32.mxu0 0.0
    %454 = vmatmul.mubr.f32.gmra.mxu0 %v384
    %v455 = vpop.f32.mrf.mxu0
    %v456 = vadd.f32 %v381, %v455
    %v457 = vpop.f32.mrf.mxu0
    %458 = vmatprep.mubr.f32.mxu0 0.0
    %459 = vmatmul.mubr.f32.gmra.mxu0 %v387
    %v460 = vpop.f32.mrf.mxu0
    %v461 = vadd.f32 %v381, %v460
    %v462 = vpop.f32.mrf.mxu0
    %463 = vdwg.mxu0
    %v464 = vmax.f32 %v456, 0.0
    %v465 = vmax.f32 %v461, 0.0
    %v466 = vld [vmem:[%s9] sm:$0x1]
    %v467 = vld [vmem:[#allocation2] sm:$0x1]
    %469 = vset.pattern.permute.xlu0 0
    %470 = vperm.xlu0 %469, %v467
    %v471 = vpop.permute.xlu0 %470
    %v473 = vlaneseq
    %v474 = vshrl.u32 %v473, 7
    %v475 = vsub.s32 0, %v474
    %v476 = vrot.slane %v471, %v475
    %v478 = vsel %vm185, %v466, 0
    %v481 = vsel %vm185, %v464, 0
    %v484 = vsel %vm185, %v465, 0
    %486 = vmatprep.subr.mxu0 0.0
    %487 = vmatpush1.xpose.msra.mxu0 0.0
    %488 = vmatprep.subr.mxu0 0.0
    %489 = vmatpush1.xpose.msra.mxu0 0.0
    %490 = vmatprep.subr.mxu0 0.0
    %491 = vmatpush1.xpose.msra.mxu0 0.0
    %492 = vmatprep.subr.mxu0 0.0
    %493 = vmatpush1.xpose.msra.mxu0 0.0
    %494 = vmatprep.subr.mxu0 0.0
    %495 = vmatpush1.xpose.msra.mxu0 0.0
    %496 = vmatprep.subr.mxu0 0.0
    %497 = vmatpush1.xpose.msra.mxu0 0.0
    %498 = vmatprep.subr.mxu0 0.0
    %499 = vmatpush1.xpose.msra.mxu0 0.0
    %500 = vmatprep.subr.mxu0 0.0
    %501 = vmatpush1.xpose.msra.mxu0 0.0
    %502 = vmatprep.subr.mxu0 0.0
    %503 = vmatpush1.xpose.msra.mxu0 0.0
    %504 = vmatprep.subr.mxu0 0.0
    %505 = vmatpush1.xpose.msra.mxu0 0.0
    %506 = vmatprep.subr.mxu0 0.0
    %507 = vmatpush1.xpose.msra.mxu0 0.0
    %508 = vmatprep.subr.mxu0 0.0
    %509 = vmatpush1.xpose.msra.mxu0 0.0
    %510 = vmatprep.subr.mxu0 0.0
    %511 = vmatpush1.xpose.msra.mxu0 0.0
    %512 = vmatprep.subr.mxu0 0.0
    %513 = vmatpush1.xpose.msra.mxu0 0.0
    %514 = vmatprep.subr.mxu0 0.0
    %515 = vmatpush1.xpose.msra.mxu0 %v484
    %516 = vmatprep.subr.mxu0 0.0
    %517 = vmatpush1.xpose.msra.mxu0 %v481
    %518 = vmatprep.subr.mxu0 0.0
    %519 = vmatpush2.xpose.msra.mxu0 0.0
    %520 = vmatprep.subr.mxu0 0.0
    %521 = vmatpush2.xpose.msra.mxu0 0.0
    %522 = vmatprep.subr.mxu0 0.0
    %523 = vmatpush2.xpose.msra.mxu0 0.0
    %524 = vmatprep.subr.mxu0 0.0
    %525 = vmatpush2.xpose.msra.mxu0 0.0
    %526 = vmatprep.subr.mxu0 0.0
    %527 = vmatpush2.xpose.msra.mxu0 0.0
    %528 = vmatprep.subr.mxu0 0.0
    %529 = vmatpush2.xpose.msra.mxu0 0.0
    %530 = vmatprep.subr.mxu0 0.0
    %531 = vmatpush2.xpose.msra.mxu0 0.0
    %532 = vmatprep.subr.mxu0 0.0
    %533 = vmatpush2.xpose.msra.mxu0 0.0
    %534 = vmatprep.subr.mxu0 0.0
    %535 = vmatpush2.xpose.msra.mxu0 0.0
    %536 = vmatprep.subr.mxu0 0.0
    %537 = vmatpush2.xpose.msra.mxu0 0.0
    %538 = vmatprep.subr.mxu0 0.0
    %539 = vmatpush2.xpose.msra.mxu0 0.0
    %540 = vmatprep.subr.mxu0 0.0
    %541 = vmatpush2.xpose.msra.mxu0 0.0
    %542 = vmatprep.subr.mxu0 0.0
    %543 = vmatpush2.xpose.msra.mxu0 0.0
    %544 = vmatprep.subr.mxu0 0.0
    %545 = vmatpush2.xpose.msra.mxu0 0.0
    %546 = vmatprep.subr.mxu0 0.0
    %547 = vmatpush2.xpose.msra.mxu0 0.0
    %548 = vmatprep.subr.mxu0 0.0
    %549 = vmatpush2.xpose.msra.mxu0 0.0
    %550 = vmatprep.mubr.f32.mxu0 0.0
    %551 = vmatmul.mubr.f32.gmra.mxu0 %v478
    %v552 = vpop.f32.mrf.mxu0
    %v553 = vadd.f32 %v476, %v552
    %v554 = vpop.f32.mrf.mxu0
    %555 = vdwg.mxu0
    %vm556 = vcmask 122880
    %557 = vst.msk [vmem:[#allocation11] sm:$0x1] %vm556, %v553
    // Predicated region
    $region62: #{tpu_custom_call.1} parent=1 // pred_check
      _
    $region63: #{tpu_custom_call.1} parent=1 // pred_check_branch
      %559 = sbr.rel (0) target = $region65
    $region64: #{tpu_custom_call.1} parent=1 // pred_region
      %s561 = ssub.s32 16, 16
      %562 = vsyncadd [#allocation5], %s561
      %s564 = sshll.u32 [#allocation11], 4
      %s565 = int_to_ptr.vmem [resolvable:$true] %s564
      %567 = dma.vmem_to_hbm [thread:$0]  %s565, 16, %s11, [#allocation5]
    $region65: #{tpu_custom_call.1} parent=1 // pred_fallthru
      _
    // Predicated region
    $region66: #{tpu_custom_call.1} parent=1 // pred_check
      _
    $region67: #{tpu_custom_call.1} parent=1 // pred_check_branch
      %569 = sbr.rel (0) target = $region69
    $region68: #{tpu_custom_call.1} parent=1 // pred_region
      %570 = dma.done [#allocation5], 16
    $region69: #{tpu_custom_call.1} parent=1 // pred_fallthru
      _
    %571 = vsyncpa [#allocation4], 1
    %572 = vsyncpa [#allocation7], 1
    %573 = vsyncpa [#allocation10], 1
    %574 = vsyncpa [#allocation5], 1

</llo_original>
